<compile_context>
chip_gen: v5e
topology: v5e:2x2
jax: 0.10.0
libtpu: 0.0.40
codegen_flags: <defaults>
</compile_context>

<pallas_src>
import numpy as np
import jax
import jax.numpy as jnp
from jax.experimental import pallas as pl
from jax.experimental.pallas import tpu as pltpu


# ----------------------------------------------------------------------------
# Parameter construction (deterministic, mirrors create_mel_filterbank exactly)
# ----------------------------------------------------------------------------
def create_mel_filterbank(sample_rate, frame_len, num_bands, min_freq, max_freq,
                          norm=True, crop=False):
    min_mel = 1127.0 * np.log1p(min_freq / 700.0)
    max_mel = 1127.0 * np.log1p(max_freq / 700.0)
    peaks_mel = np.linspace(min_mel, max_mel, num_bands + 2, dtype=np.float32)
    peaks_hz = 700.0 * np.expm1(peaks_mel / 1127.0)
    peaks_bin = peaks_hz * frame_len / sample_rate
    input_bins = frame_len // 2 + 1
    if crop:
        input_bins = min(input_bins,
                         int(np.ceil(max_freq * frame_len / float(sample_rate))))
    x = np.arange(input_bins, dtype=peaks_bin.dtype)[:, np.newaxis]
    l, c, r = peaks_bin[0:-2], peaks_bin[1:-1], peaks_bin[2:]
    tri_left = (x - l) / (c - l)
    tri_right = (x - r) / (c - r)
    tri = np.minimum(tri_left, tri_right)
    filterbank = np.maximum(tri, 0.0)
    if norm:
        filterbank = filterbank / filterbank.sum(0)
    return filterbank.astype(np.float32)


# ----------------------------------------------------------------------------
# Pallas kernel: one (Fc, T_tile) slab of x against the resident bank^T
# ----------------------------------------------------------------------------
def _mel_kernel(bank_t_ref, x_ref, o_ref):
    # bank_t_ref: (M, Fc)   x_ref: (Fc, Tt)   o_ref: (M, Tt)
    o_ref[...] = jnp.dot(bank_t_ref[...], x_ref[...],
                         preferred_element_type=jnp.float32).astype(o_ref.dtype)


def _pick_t_tile(T, max_tile=2048):
    """Largest multiple of 128 (<= max_tile) dividing T; else full-extent T."""
    if T % 128 == 0:
        for cand in (2048, 1024, 512, 256, 128):
            if cand <= max_tile and cand <= T and T % cand == 0:
                return cand
    return T  # full extent is always a legal block (equals array dim)


def mel_filter_forward(x, bank_t):
    """x: (B, C, F, T) f32; bank_t: (M, Fc) f32 (= bank.T)  ->  (B, C, M, T)."""
    B, C, F, T = x.shape
    M, Fc = bank_t.shape

    # If the crop length is not sublane-aligned (and not the full extent),
    # zero-pad bank^T along Fc so the x block stays a legal tile; the extra
    # rows of x are multiplied by zero filter weights and contribute nothing.
    if Fc % 8 != 0 and Fc != F:
        fc_eff = min(((Fc + 7) // 8) * 8, F)
        bank_t = jnp.pad(bank_t, ((0, 0), (0, fc_eff - Fc)))
        Fc = fc_eff

    BC = B * C
    xr = x.reshape(BC, F, T)                 # free reshape, no data movement

    t_tile = _pick_t_tile(T)
    grid = (BC, T // t_tile)

    out = pl.pallas_call(
        _mel_kernel,
        out_shape=jax.ShapeDtypeStruct((BC, M, T), x.dtype),
        grid=grid,
        in_specs=[
            # Tiny constant operand; index never changes -> fetched once.
            pl.BlockSpec((M, Fc), lambda bc, t: (0, 0)),
            # Crop F -> Fc via the block shape; T on lanes.
            pl.BlockSpec((None, Fc, t_tile), lambda bc, t: (bc, 0, t)),
        ],
        out_specs=pl.BlockSpec((None, M, t_tile), lambda bc, t: (bc, 0, t)),
        compiler_params=pltpu.CompilerParams(
            dimension_semantics=("parallel", "parallel")),
    )(bank_t, xr)

    return out.reshape(B, C, M, T)           # free reshape


# ----------------------------------------------------------------------------
# Demo / self-check
# ----------------------------------------------------------------------------
if __name__ == "__main__":
    # MelFilter(sample_rate=16000, winsize=64, num_bands=8,
    #           min_freq=100.0, max_freq=8000.0)
    sample_rate, winsize, num_bands = 16000, 64, 8
    min_freq, max_freq = 100.0, 8000.0
    bank_np = create_mel_filterbank(sample_rate, winsize, num_bands,
                                    min_freq, max_freq, crop=True)   # (Fc=32, M=8)
    bank = jnp.asarray(bank_np)
    bank_t = jnp.asarray(np.ascontiguousarray(bank_np.T))            # (M=8, Fc=32)

    # Spectrogram input: (batch=2, channels=4, freq=winsize//2+1=33, time=16)
    key = jax.random.PRNGKey(0)
    B, C, T = 2, 4, 16
    F_bins = winsize // 2 + 1
    x = jax.random.uniform(key, (B, C, F_bins, T), dtype=jnp.float32)

    out = mel_filter_forward(x, bank_t)
    out = jax.block_until_ready(out)

    # Reference in plain JAX (same math as the PyTorch forward).
    Fc = bank.shape[0]
    ref = jnp.swapaxes(
        jnp.matmul(jnp.swapaxes(x, -1, -2)[..., :Fc], bank), -1, -2)
    assert out.shape == (B, C, num_bands, T)
    np.testing.assert_allclose(np.asarray(out), np.asarray(ref),
                               rtol=1e-5, atol=1e-5)

    print("KERNEL_OK")
</pallas_src>

<mosaic_0001>
module attributes {stable_mosaic.version = 11 : i64} {
  func.func @_mel_kernel(%arg0: i32, %arg1: i32, %arg2: memref<8x32xf32, #tpu.memory_space<vmem>>, %arg3: memref<1x32x16xf32, #tpu.memory_space<vmem>>, %arg4: memref<1x8x16xf32, #tpu.memory_space<vmem>>) attributes {dimension_semantics = [#tpu.dimension_semantics<parallel>, #tpu.dimension_semantics<parallel>], iteration_bounds = array<i64: 8, 1>, scalar_prefetch = 0 : i64, scratch_operands = 0 : i64, tpu.core_type = #tpu.core_type<tc>, window_params = [{pipeline_mode = #tpu.pipeline_mode<synchronous>, transform_indices = @transform_0, window_bounds = array<i64: 8, 32>}, {transform_indices = @transform_1, window_bounds = array<i64: 1, 32, 16>}, {transform_indices = @transform_2, window_bounds = array<i64: 1, 8, 16>}]} {
    %c0 = arith.constant 0 : index
    %c0_0 = arith.constant 0 : index
    %0 = vector.load %arg2[%c0, %c0_0] : memref<8x32xf32, #tpu.memory_space<vmem>>, vector<8x32xf32>
    %c0_1 = arith.constant 0 : index
    %c0_2 = arith.constant 0 : index
    %c0_3 = arith.constant 0 : index
    %1 = vector.load %arg3[%c0_1, %c0_2, %c0_3] : memref<1x32x16xf32, #tpu.memory_space<vmem>>, vector<1x32x16xf32>
    %2 = vector.shape_cast %1 : vector<1x32x16xf32> to vector<32x16xf32>
    %cst = arith.constant dense<0.000000e+00> : vector<8x16xf32>
    %3 = tpu.matmul %0, %2, %cst {dimension_numbers = #tpu.dot_dimension_numbers<[1], [0], [0], [1], [0, 0, 1, 1], [], []>} : vector<8x32xf32>, vector<32x16xf32>, vector<8x16xf32> -> vector<8x16xf32>
    %c0_4 = arith.constant 0 : index
    %c0_5 = arith.constant 0 : index
    %c0_6 = arith.constant 0 : index
    %4 = vector.load %arg4[%c0_4, %c0_5, %c0_6] : memref<1x8x16xf32, #tpu.memory_space<vmem>>, vector<1x8x16xf32>
    %5 = vector.shape_cast %4 : vector<1x8x16xf32> to vector<8x16xf32>
    %6 = vector.shape_cast %3 : vector<8x16xf32> to vector<1x8x16xf32>
    tpu.vector_store %arg4[%c0_4, %c0_5, %c0_6], %6 {strides = array<i32>} : memref<1x8x16xf32, #tpu.memory_space<vmem>>, vector<1x8x16xf32>,
    return
  }
  func.func @transform_0(%arg0: i32, %arg1: i32) -> (i32, i32) {
    %c0_i32 = arith.constant 0 : i32
    %c0_i32_0 = arith.constant 0 : i32
    %c0_i32_1 = arith.constant 0 : i32
    return %c0_i32, %c0_i32_0 : i32, i32
  }
  func.func @transform_1(%arg0: i32, %arg1: i32) -> (i32, i32, i32) {
    %c0_i32 = arith.constant 0 : i32
    %c0_i32_0 = arith.constant 0 : i32
    return %arg0, %c0_i32, %arg1 : i32, i32, i32
  }
  func.func @transform_2(%arg0: i32, %arg1: i32) -> (i32, i32, i32) {
    %c0_i32 = arith.constant 0 : i32
    %c0_i32_0 = arith.constant 0 : i32
    return %arg0, %c0_i32, %arg1 : i32, i32, i32
  }
}

</mosaic_0001>

<llo_original>
// kernel: tpu_custom_call.1
$region0: #{tpu_custom_call.1}
  #allocation0 [shape = 'u32[]', space=smem, size = 0x4, offset = 0x4, fixed_abs, tag = 'smem constant byte address 0x4 - core index']
  #allocation1 [shape = 'u32[72,128]{1,0:T(1,128)}', space=vmem, size = 0x9000, scoped, tag = 'internal scratch']
  %s0 = inlined_call_operand.vmem [shape: f32[8,32], index: 0, kind: input, shape index: {}]
  %s1 = inlined_call_operand.vmem [shape: f32[8,33,16], index: 1, kind: input, shape index: {}]
  %s2 = inlined_call_operand.hbm [shape: f32[8,8,16], index: 2, kind: output, shape index: {}]
  %s3 = sld [smem:[#allocation0]]
  $region41: #{tpu_custom_call.1} parent=0
    _
  %s5 = ssub.s32 1, %s3
  %s6 = scalar_select 0, %s5, %s3
  $region1: #{tpu_custom_call.1} parent=0
    #allocation2 [shape = 'u8[8192]{0}', space=vmem, size = 0x2000, scoped, tag = 'output window, operand 0']
    #allocation3 [shape = 's32[2]{0}', space=sflag, size = 0x8, scoped, tag = 'scoped memory for tpu_custom_call.1']
    %7 = vsyncpa [#allocation3], 0
    %s8 = scalar_lea.sflag [#allocation3], 1
    %9 = vsyncpa %s8, 0
    loop: start=0, step=1, limit=10
    $region2: #{tpu_custom_call.1} parent=1 // loop_pre_header
      _
    $region3: #{tpu_custom_call.1} parent=1 // loop_header
      %s11 = sphi 0, %s15
      %p12 = scmp.ge.s32.totalorder %s11, 10
      %s18 = sphi 0, %s30
      %s19 = sphi 0, %s26
      %s20 = sphi 0, %s18
      %s21 = sphi 0, %s19
      %s22 = sphi 0, %s20
      %s23 = sphi 0, %s21
      %s31 = sphi 0, %s31
      %s33 = sphi 0, %s31
      %s34 = sphi 0, %s33
      %s48 = sphi 0, %s34
      %s56 = sphi 0, %s58
      %s59 = sphi 0, %s56
      %s60 = sphi 0, %s59
      %s76 = sphi 0, %s60
      %s84 = sphi 0, %s86
      %s87 = sphi 0, %s84
      %s88 = sphi 0, %s87
      %s104 = sphi 0, %s88
    $region4: #{tpu_custom_call.1} parent=1 // loop_header_branch
      %14 = sbr.rel (%p12) target = $region8
    $region5: #{tpu_custom_call.1} parent=1 // loop_body
      %s16 = ssub.s32 %s11, 1
      %s17 = ssub.s32 %s11, 2
      %s24 = sadd.s32 1, %s19
      %p25 = scmp.ge.s32.totalorder %s24, 1
      %s26 = scalar_select %p25, 0, %s24
      %s27 = sadd.s32 1, %s18
      %s28 = scalar_select %p25, %s27, %s18
      %p29 = scmp.ge.s32.totalorder %s28, 8
      %s30 = scalar_select %p29, 0, %s28
      %s32 = sadd.s32 %s31, 1
      %p35 = scmp.eq.s32.totalorder %s11, 7
      %p36 = scmp.ne.s32.totalorder %s31, %s33
      %p37 = scmp.eq.s32.totalorder %s11, 0
      %p38 = por %p36, %p37
      %p39 = scmp.ne.s32.totalorder %s31, %s33
      %p40 = scmp.eq.s32.totalorder %s16, 7
      %p41 = por %p39, %p40
      %p42 = scmp.ne.s32.totalorder %s33, %s34
      %p43 = scmp.eq.s32.totalorder %s16, 0
      %p44 = por %p42, %p43
      %p45 = scmp.ne.s32.totalorder %s33, %s34
      %p46 = scmp.eq.s32.totalorder %s17, 7
      %p47 = por %p45, %p46
      %p49 = scmp.ne.s32.totalorder %s34, %s48
      %p50 = scmp.eq.s32.totalorder %s17, 0
      %p51 = por %p49, %p50
      %s52 = ssub.s32 %s18, %s30
      %s53 = ssub.s32 %s19, %s26
      %s54 = sor.u32 %s52, %s53
      %p55 = scmp.eq.s32.totalorder %s54, 0
      %s57 = sadd.s32 %s56, 1
      %s58 = scalar_select %p55, %s56, %s57
      %p61 = pneg %p55
      %p62 = scmp.eq.s32.totalorder %s11, 7
      %p63 = por %p61, %p62
      %p64 = scmp.ne.s32.totalorder %s56, %s59
      %p65 = scmp.eq.s32.totalorder %s11, 0
      %p66 = por %p64, %p65
      %p67 = scmp.ne.s32.totalorder %s56, %s59
      %p68 = scmp.eq.s32.totalorder %s16, 7
      %p69 = por %p67, %p68
      %p70 = scmp.ne.s32.totalorder %s59, %s60
      %p71 = scmp.eq.s32.totalorder %s16, 0
      %p72 = por %p70, %p71
      %p73 = scmp.ne.s32.totalorder %s59, %s60
      %p74 = scmp.eq.s32.totalorder %s17, 7
      %p75 = por %p73, %p74
      %p77 = scmp.ne.s32.totalorder %s60, %s76
      %p78 = scmp.eq.s32.totalorder %s17, 0
      %p79 = por %p77, %p78
      %s80 = ssub.s32 %s18, %s30
      %s81 = ssub.s32 %s19, %s26
      %s82 = sor.u32 %s80, %s81
      %p83 = scmp.eq.s32.totalorder %s82, 0
      %s85 = sadd.s32 %s84, 1
      %s86 = scalar_select %p83, %s84, %s85
      %p89 = pneg %p83
      %p90 = scmp.eq.s32.totalorder %s11, 7
      %p91 = por %p89, %p90
      %p92 = scmp.ne.s32.totalorder %s84, %s87
      %p93 = scmp.eq.s32.totalorder %s11, 0
      %p94 = por %p92, %p93
      %p95 = scmp.ne.s32.totalorder %s84, %s87
      %p96 = scmp.eq.s32.totalorder %s16, 7
      %p97 = por %p95, %p96
      %p98 = scmp.ne.s32.totalorder %s87, %s88
      %p99 = scmp.eq.s32.totalorder %s16, 0
      %p100 = por %p98, %p99
      %p101 = scmp.ne.s32.totalorder %s87, %s88
      %p102 = scmp.eq.s32.totalorder %s17, 7
      %p103 = por %p101, %p102
      %p105 = scmp.ne.s32.totalorder %s88, %s104
      %p106 = scmp.eq.s32.totalorder %s17, 0
      %p107 = por %p105, %p106
      %p108 = scmp.le.s32.totalorder 1, %s11
      %p109 = scmp.lt.s32.totalorder %s11, 9
      %p110 = pnand %p108, %p109
      %p111 = pneg %p110
      // Predicated region
      $region9: #{tpu_custom_call.1} parent=5 // pred_check
        _
      $region10: #{tpu_custom_call.1} parent=5 // pred_check_branch
        %113 = sbr.rel (%p110) target = $region12
      $region11: #{tpu_custom_call.1} parent=5 // pred_region
        %s114 = ssub.s32 %s11, 1
        // Predicated region
        $region13: #{tpu_custom_call.1} parent=11 // pred_check
          %p115 = pneg %p44
        $region14: #{tpu_custom_call.1} parent=11 // pred_check_branch
          %117 = sbr.rel (%p115) target = $region16
        $region15: #{tpu_custom_call.1} parent=11 // pred_region
          _
        $region16: #{tpu_custom_call.1} parent=11 // pred_fallthru
          _
      $region12: #{tpu_custom_call.1} parent=5 // pred_fallthru
        _
      %p118 = scmp.lt.s32.totalorder %s11, 8
      // Predicated region
      $region17: #{tpu_custom_call.1} parent=5 // pred_check
        %p119 = pneg %p118
      $region18: #{tpu_custom_call.1} parent=5 // pred_check_branch
        %121 = sbr.rel (%p119) target = $region20
      $region19: #{tpu_custom_call.1} parent=5 // pred_region
        // Predicated region
        $region21: #{tpu_custom_call.1} parent=19 // pred_check
          %p122 = pneg %p66
        $region22: #{tpu_custom_call.1} parent=19 // pred_check_branch
          %124 = sbr.rel (%p122) target = $region24
        $region23: #{tpu_custom_call.1} parent=19 // pred_region
          %p125 = scmp.lt.s32.totalorder %s18, 7
          %s126 = scalar_select %p125, %s18, 7
          %p127 = scmp.lt.s32.totalorder %s19, 0
          %s128 = scalar_select %p127, %s19, 0
          %s129 = smul.addr %s126, 5
          %s130 = sadd.s32 %s128, %s129
          %s131 = smul.addr %s130, 8
          %s132 = scalar_lea.vmem %s1, %s131
        $region24: #{tpu_custom_call.1} parent=19 // pred_fallthru
          _
      $region20: #{tpu_custom_call.1} parent=5 // pred_fallthru
        _
      %p133 = scmp.le.s32.totalorder 1, %s11
      %p134 = scmp.lt.s32.totalorder %s11, 9
      %p135 = pnand %p133, %p134
      %p136 = pneg %p135
      // Predicated region
      $region25: #{tpu_custom_call.1} parent=5 // pred_check
        _
      $region26: #{tpu_custom_call.1} parent=5 // pred_check_branch
        %138 = sbr.rel (%p135) target = $region28
      $region27: #{tpu_custom_call.1} parent=5 // pred_region
        %s139 = ssub.s32 %s11, 1
        %p140 = pneg %p44
        %p141 = pneg %p41
        %p142 = scmp.lt.s32.totalorder %s20, 7
        %s143 = scalar_select %p142, %s20, 7
        %p144 = scmp.lt.s32.totalorder %s21, 0
        %s145 = scalar_select %p144, %s21, 0
        %s146 = smul.addr %s143, 5
        %s147 = sadd.s32 %s145, %s146
        %s148 = smul.addr %s147, 8
        %s149 = scalar_lea.vmem %s1, %s148
        %p150 = pneg %p72
        %p151 = pneg %p69
        %p152 = pneg %p100
        %p153 = pneg %p97
        %s154 = sand.u32 %s87, 1
        %s155 = scalar_lea.sflag [#allocation3], %s154
        %s156 = sand.u32 %s87, 1
        %s157 = smul.addr %s156, 8
        %s158 = scalar_lea.vmem [#allocation2], %s157
        %p159 = scmp.lt.s32.totalorder %s20, 7
        %s160 = scalar_select %p159, %s20, 7
        %p161 = scmp.lt.s32.totalorder %s21, 0
        %s162 = scalar_select %p161, %s21, 0
        %s163 = smul.addr %s160, 5
        %s164 = sadd.s32 %s162, %s163
        %s165 = smul.addr %s164, 8
        %s166 = scalar_lea.vmem %s1, %s165
        %v167 = vld [vmem:[%s0] sm:$0xff]
        %v168 = vld [vmem:[%s166] sm:$0xff]
        %v169 = vld [vmem:[%s166 + $0x8] sm:$0xff]
        %v170 = vld [vmem:[%s166 + $0x10] sm:$0xff]
        %v171 = vld [vmem:[%s166 + $0x18] sm:$0xff]
        %vm172 = vcmask 261120
        %v174 = vsel %vm172, %v167, 0
        %176 = vmatpush.msra.mxu0 0.0
        %177 = vmatpush.msra.mxu0 0.0
        %178 = vmatpush.msra.mxu0 0.0
        %179 = vmatpush.msra.mxu0 0.0
        %180 = vmatpush.msra.mxu0 0.0
        %181 = vmatpush.msra.mxu0 0.0
        %182 = vmatpush.msra.mxu0 0.0
        %183 = vmatpush.msra.mxu0 0.0
        %184 = vmatpush.msra.mxu0 0.0
        %185 = vmatpush.msra.mxu0 0.0
        %186 = vmatpush.msra.mxu0 0.0
        %187 = vmatpush.msra.mxu0 0.0
        %188 = vmatpush.msra.mxu0 %v171
        %189 = vmatpush.msra.mxu0 %v170
        %190 = vmatpush.msra.mxu0 %v169
        %191 = vmatpush.msra.mxu0 %v168
        %192 = vmatmul.f32.gmra.mxu0 %v174
        %v193 = vpop.f32.mrf.mxu0
        %v194 = vadd.f32 0.0, %v193
        %195 = vdwg.mxu0
        %vm196 = vcmask 130048
        %197 = vst.msk [vmem:[%s158] sm:$0xff] %vm196, %v194
        %s198 = sand.u32 %s87, 1
        %s199 = scalar_lea.sflag [#allocation3], %s198
        %s200 = sand.u32 %s87, 1
        %s201 = smul.addr %s200, 8
        %s202 = scalar_lea.vmem [#allocation2], %s201
        // Predicated region
        $region29: #{tpu_custom_call.1} parent=27 // pred_check
          %p203 = pneg %p97
        $region30: #{tpu_custom_call.1} parent=27 // pred_check_branch
          %205 = sbr.rel (%p203) target = $region32
        $region31: #{tpu_custom_call.1} parent=27 // pred_region
          %207 = vsyncadd %s199, 0
          %s208 = sadd.s32 %s21, %s20
          %s209 = smul.addr %s208, 8
          %s210 = scalar_lea.hbm %s2, %s209
          %s212 = sshll.u32 %s202, 4
          %s213 = int_to_ptr.vmem [resolvable:$true] %s212
          %s214 = sshll.u32 %s210, 4
          %s215 = int_to_ptr.hbm [resolvable:$true] %s214
          %217 = dma.vmem_to_hbm [thread:$0]  %s213, 128, %s215, %s199
        $region32: #{tpu_custom_call.1} parent=27 // pred_fallthru
          _
      $region28: #{tpu_custom_call.1} parent=5 // pred_fallthru
        _
      %p218 = scmp.le.s32.totalorder 2, %s11
      // Predicated region
      $region33: #{tpu_custom_call.1} parent=5 // pred_check
        %p219 = pneg %p218
      $region34: #{tpu_custom_call.1} parent=5 // pred_check_branch
        %221 = sbr.rel (%p219) target = $region36
      $region35: #{tpu_custom_call.1} parent=5 // pred_region
        %s222 = ssub.s32 %s11, 2
        // Predicated region
        $region37: #{tpu_custom_call.1} parent=35 // pred_check
          %p223 = pneg %p103
        $region38: #{tpu_custom_call.1} parent=35 // pred_check_branch
          %225 = sbr.rel (%p223) target = $region40
        $region39: #{tpu_custom_call.1} parent=35 // pred_region
          %s226 = sand.u32 %s88, 1
          %s227 = scalar_lea.sflag [#allocation3], %s226
          %s228 = sand.u32 %s88, 1
          %s229 = smul.addr %s228, 8
          %s230 = scalar_lea.vmem [#allocation2], %s229
          %232 = dma.done %s227, 128
        $region40: #{tpu_custom_call.1} parent=35 // pred_fallthru
          _
      $region36: #{tpu_custom_call.1} parent=5 // pred_fallthru
        _
    $region6: #{tpu_custom_call.1} parent=1 // loop_footer
      %s15 = sadd.s32 1, %s11
    $region7: #{tpu_custom_call.1} parent=1 // loop_footer_branch
      %10 = sbr.rel target = $region3
    $region8: #{tpu_custom_call.1} parent=1 // loop_exit
      _
    %233 = vsyncpa [#allocation3], 1
    %s234 = scalar_lea.sflag [#allocation3], 1
    %235 = vsyncpa %s234, 1

</llo_original>
